<compile_context>
chip_gen: v7x
topology: tpu7x:2x2x1
jax: 0.10.0
libtpu: 0.0.40
codegen_flags: <defaults>
</compile_context>

<pallas_src>
import functools
import math

import jax
import jax.numpy as jnp
import numpy as np
from jax.experimental import pallas as pl
from jax.experimental.pallas import tpu as pltpu


def _round_up(x, m):
    return ((x + m - 1) // m) * m


def _vmem_budget_bytes():
    """Generation-aware usable-VMEM budget (also used as the scoped limit)."""
    try:
        cap = int(pltpu.get_tpu_info().vmem_capacity_bytes)
    except Exception:
        # Not queryable (e.g. interpret mode) -> assume the smallest part (v7x).
        cap = 64 << 20
    # ~75% of physical, capped at 100 MiB: ~96 MiB on v5e/v6e (128 MiB VMEM),
    # ~48 MiB on v7x (64 MiB per TensorCore).
    return int(min((cap * 3) // 4, 100 << 20))


def _pick_batch_block(B, n_pad, g_pad, H, esize, budget_bytes):
    """Largest batch block whose pipelined tiles + live temporaries fit."""
    # Double-buffered BlockSpec I/O tiles.
    io_per_b = (n_pad * H * esize          # embeddings
                + g_pad * H * esize        # last-node embeddings
                + g_pad * n_pad * 4        # distances (f32)
                + g_pad * n_pad * 1        # visited mask (int8)
                + H * 4                    # q_graph
                + g_pad * n_pad * 4)       # output (f32)
    io_per_b *= 2
    # Live in-kernel temporaries on the (Gp, Np) tile: score, masked score,
    # exp (f32) + mask_visited (compute dtype), plus small (Gp, H) queries.
    tmp_per_b = g_pad * n_pad * (3 * 4 + esize) + 4 * g_pad * H * 4
    per_b = io_per_b + tmp_per_b
    fixed = 2 * (H * H * esize) * 2        # the two (H,H) weights, 2x buffered
    bb = max(1, int((budget_bytes - fixed) // max(per_b, 1)))
    bb = min(bb, B)
    if B >= 2:
        # Keep >= 2 grid steps so the second TensorCore (v7x megacore / the
        # "parallel" dimension) is never idle.
        bb = min(bb, -(-B // 2))
    return max(1, int(bb))


def _decoder_kernel(emb_ref, last_emb_ref, dist_ref, mask_ref, qg_ref,
                    w_lf_ref, w_v_ref, out_ref, *,
                    inv_sqrt_2, tanh_clipping):
    bb, g_pad, h = last_emb_ref.shape
    cd = emb_ref.dtype                              # MXU operand dtype

    emb = emb_ref[...]                              # (bb, Np, H)
    visited = mask_ref[...] != 0                    # (bb, Gp, Np) bool

    # q_last + q_first folded into one matmul (W_lf = (Wq_last + Wq_first) /
    # sqrt(H)); flatten batch*group so the MXU sees M = bb*Gp rows at once.
    last_flat = last_emb_ref[...].reshape(bb * g_pad, h)
    q_lf = jnp.dot(last_flat, w_lf_ref[...],
                   preferred_element_type=jnp.float32)            # (bb*Gp, H)

    # Visited-nodes query: mask_visited in {0,1}; 1/N and 1/sqrt(H) are folded
    # into W_visited XLA-side.
    mask_visited = visited.astype(cd)
    vsum = jnp.einsum('bgn,bnh->bgh', mask_visited, emb,
                      preferred_element_type=jnp.float32)         # (bb, Gp, H)
    q_v = jnp.dot(vsum.reshape(bb * g_pad, h).astype(cd), w_v_ref[...],
                  preferred_element_type=jnp.float32)             # (bb*Gp, H)

    # Final query (q_graph pre-scaled by 1/sqrt(H) in the wrapper).
    q = (q_lf + q_v).reshape(bb, g_pad, h) + qg_ref[...]          # (bb, Gp, H)

    # score = q @ emb^T (contraction over H); 1/sqrt(H) already folded into q.
    score = jnp.einsum('bgh,bnh->bgn', q.astype(cd), emb,
                       preferred_element_type=jnp.float32)        # (bb, Gp, Np)
    score = score - dist_ref[...] * inv_sqrt_2

    s = tanh_clipping * jnp.tanh(score)
    # Visited / padded nodes -> -1e8.  Identical to adding the {0,-1e8} mask
    # (exp underflows to exactly 0 either way) and it also clamps any garbage
    # living in padded node columns.
    s = jnp.where(visited, jnp.float32(-1e8), s)

    # Softmax WITHOUT max-subtraction: |s| <= tanh_clipping (or -1e8), so exp
    # cannot overflow; eps guards fully-masked (padded) rows against 0/0.
    e = jnp.exp(s)
    denom = jnp.sum(e, axis=-1, keepdims=True) + jnp.float32(1e-30)
    # Exact reciprocal on the tiny (bb, Gp, 1) tensor -> rows sum to 1.0.
    out_ref[...] = e * (1.0 / denom)


def decoder_forward(last_node, group_ninf_mask, embeddings, dists, params,
                    tanh_clipping=10.0, compute_dtype=jnp.float32):
    """Pallas implementation of DecoderForLarge.forward (multi_pointer=1)."""
    B, N, H = embeddings.shape
    G = group_ninf_mask.shape[1]
    wg, wf, wl, wv = params  # each (H, H), applied as x @ W
    hi = jax.lax.Precision.HIGHEST

    inv_sqrt_h = 1.0 / math.sqrt(H)
    # Fold the cheap scalar scales into the (H,H) weights / q_graph (one-time).
    w_lf = (wl + wf) * inv_sqrt_h                    # Wq_last + Wq_first folded
    w_vs = wv * (inv_sqrt_h / N)                     # W_visited with 1/N,1/sqrt(H)
    q_graph = jnp.einsum('bnh,hk->bnk',
                         embeddings.mean(axis=1, keepdims=True), wg,
                         precision=hi) * inv_sqrt_h                 # (B, 1, H)

    # Cheap XLA-side gathers the kernel shouldn't redo.
    idx = last_node.astype(jnp.int32)[:, :, None]                   # (B, G, 1)
    last_emb = jnp.take_along_axis(embeddings, idx, axis=1)         # (B, G, H)
    distances = jnp.take_along_axis(dists, idx, axis=1)             # (B, G, N)
    # TODO(synk): move this distance-row gather into the kernel (scalar
    # prefetch of last_node + dists in HBM via pl.ANY + make_async_copy) to
    # avoid materializing and re-reading a full (B,G,N) f32 array.

    # NOTE: assumes group_ninf_mask entries are exactly 0.0 or -inf (the TSP
    # decoder invariant); arbitrary finite mask values would need the float
    # mask streamed instead of this int8 {0,1} encoding.
    mask_i8 = (group_ninf_mask == -jnp.inf).astype(jnp.int8)        # 1 = visited

    esize = jnp.dtype(compute_dtype).itemsize
    g_mult = 16 if esize < 4 else 8                  # bf16 sublane packing
    n_pad = _round_up(N, 128)                        # lane-dense output stores
    g_pad = _round_up(G, g_mult)
    vmem_budget = _vmem_budget_bytes()
    bb = _pick_batch_block(B, n_pad, g_pad, H, esize, vmem_budget)
    b_pad = _round_up(B, bb)

    cd = compute_dtype
    emb_p = jnp.pad(embeddings, ((0, b_pad - B), (0, n_pad - N), (0, 0))).astype(cd)
    last_emb_p = jnp.pad(last_emb, ((0, b_pad - B), (0, g_pad - G), (0, 0))).astype(cd)
    dist_p = jnp.pad(distances, ((0, b_pad - B), (0, g_pad - G), (0, n_pad - N)))
    # Padded node columns / group rows are marked "visited" -> forced to -1e8.
    mask_p = jnp.pad(mask_i8, ((0, b_pad - B), (0, g_pad - G), (0, n_pad - N)),
                     constant_values=1)
    qg_p = jnp.pad(q_graph, ((0, b_pad - B), (0, 0), (0, 0)))

    kernel = functools.partial(
        _decoder_kernel,
        inv_sqrt_2=1.0 / math.sqrt(2.0),
        tanh_clipping=float(tanh_clipping))

    probs = pl.pallas_call(
        kernel,
        out_shape=jax.ShapeDtypeStruct((b_pad, g_pad, n_pad), jnp.float32),
        grid=(b_pad // bb,),
        in_specs=[
            pl.BlockSpec((bb, n_pad, H), lambda b: (b, 0, 0)),      # embeddings
            pl.BlockSpec((bb, g_pad, H), lambda b: (b, 0, 0)),      # last_emb
            pl.BlockSpec((bb, g_pad, n_pad), lambda b: (b, 0, 0)),  # distances
            pl.BlockSpec((bb, g_pad, n_pad), lambda b: (b, 0, 0)),  # mask (int8)
            pl.BlockSpec((bb, 1, H), lambda b: (b, 0, 0)),          # q_graph
            pl.BlockSpec((H, H), lambda b: (0, 0)),                 # W_lf
            pl.BlockSpec((H, H), lambda b: (0, 0)),                 # W_visited
        ],
        out_specs=pl.BlockSpec((bb, g_pad, n_pad), lambda b: (b, 0, 0)),
        compiler_params=pltpu.CompilerParams(
            dimension_semantics=("parallel",),
            vmem_limit_bytes=int(vmem_budget)),
    )(emb_p, last_emb_p, dist_p, mask_p, qg_p,
      w_lf.astype(cd), w_vs.astype(cd))

    return probs[:B, :G, :N]


def decoder_reference(last_node, group_ninf_mask, embeddings, dists, params,
                      tanh_clipping=10.0):
    """Pure-JAX reference matching the PyTorch module semantics."""
    B, N, H = embeddings.shape
    wg, wf, wl, wv = params
    hi = jax.lax.Precision.HIGHEST

    last_emb = jax.vmap(lambda e, i: e[i])(embeddings, last_node)    # (B, G, H)
    distances = jax.vmap(lambda d, i: d[i])(dists, last_node)        # (B, G, N)

    q_graph = jnp.einsum('bnh,hk->bnk', embeddings.mean(1, keepdims=True), wg,
                         precision=hi)
    q_last = jnp.einsum('bgh,hk->bgk', last_emb, wl, precision=hi)
    q_first = jnp.einsum('bgh,hk->bgk', last_emb, wf, precision=hi)

    mask_visited = jnp.where(group_ninf_mask == -jnp.inf, 1.0, group_ninf_mask)
    q_visited = jnp.einsum(
        'bgh,hk->bgk',
        jnp.einsum('bgn,bnh->bgh', mask_visited, embeddings, precision=hi) / N,
        wv, precision=hi)

    final_q = q_last + q_first + q_graph + q_visited
    score = jnp.einsum('bgh,bnh->bgn', final_q, embeddings,
                       precision=hi) / math.sqrt(H) \
        - distances / math.sqrt(2.0)
    score_clipped = tanh_clipping * jnp.tanh(score)
    mask_prob = jnp.where(group_ninf_mask == -jnp.inf, -1e8, group_ninf_mask)
    return jax.nn.softmax(score_clipped + mask_prob, axis=-1)


if __name__ == "__main__":
    B, N, H, G = 2, 16, 32, 8   # batch, nodes, embedding_dim, group size

    key = jax.random.PRNGKey(0)
    k_emb, k_xy, k_last, kg, kf, kl, kv = jax.random.split(key, 7)

    embeddings = jax.random.normal(k_emb, (B, N, H), dtype=jnp.float32)

    # Symmetric Euclidean distance matrix from random 2-D coordinates.
    xy = jax.random.uniform(k_xy, (B, N, 2), dtype=jnp.float32)
    dists = jnp.sqrt(
        jnp.sum((xy[:, :, None, :] - xy[:, None, :, :]) ** 2, axis=-1) + 1e-12)

    last_node = jax.random.randint(k_last, (B, G), 0, N, dtype=jnp.int32)

    # group_ninf_mask: -inf at the already-visited (last) node, 0 elsewhere.
    onehot = jax.nn.one_hot(last_node, N, dtype=jnp.float32)        # (B, G, N)
    group_ninf_mask = jnp.where(onehot > 0, -jnp.inf, 0.0).astype(jnp.float32)

    scale = 1.0 / math.sqrt(H)
    params = tuple(
        (jax.random.normal(k, (H, H), dtype=jnp.float32) * scale)
        for k in (kg, kf, kl, kv))

    # --- f32 MXU path: compared elementwise against the pure-JAX reference.
    probs = decoder_forward(last_node, group_ninf_mask, embeddings, dists, params)
    probs = jax.block_until_ready(probs)
    ref = jax.block_until_ready(
        decoder_reference(last_node, group_ninf_mask, embeddings, dists, params))

    assert probs.shape == (B, G, N)
    np.testing.assert_allclose(np.asarray(probs), np.asarray(ref),
                               rtol=2e-3, atol=2e-3)
    # Exact normalization (no approximate reciprocal) -> rows sum to 1.
    assert np.allclose(np.asarray(probs).sum(-1), 1.0, atol=1e-3)

    # --- bf16 MXU-operand path (per perf review).  tanh_clipping*tanh
    # amplifies bf16 matmul rounding, so only structural properties are
    # checked here (shape, finiteness, exact row normalization).
    probs_bf16 = decoder_forward(last_node, group_ninf_mask, embeddings, dists,
                                 params, compute_dtype=jnp.bfloat16)
    probs_bf16 = np.asarray(jax.block_until_ready(probs_bf16))
    assert probs_bf16.shape == (B, G, N)
    assert np.isfinite(probs_bf16).all()
    assert np.allclose(probs_bf16.sum(-1), 1.0, atol=2e-3)

    print("KERNEL_OK")
</pallas_src>

<mosaic_0001>
module attributes {stable_mosaic.version = 11 : i64} {
  func.func @_decoder_kernel(%arg0: i32, %arg1: memref<1x128x32xf32, #tpu.memory_space<vmem>>, %arg2: memref<1x8x32xf32, #tpu.memory_space<vmem>>, %arg3: memref<1x8x128xf32, #tpu.memory_space<vmem>>, %arg4: memref<1x8x128xi8, #tpu.memory_space<vmem>>, %arg5: memref<1x1x32xf32, #tpu.memory_space<vmem>>, %arg6: memref<32x32xf32, #tpu.memory_space<vmem>>, %arg7: memref<32x32xf32, #tpu.memory_space<vmem>>, %arg8: memref<1x8x128xf32, #tpu.memory_space<vmem>>) attributes {dimension_semantics = [#tpu.dimension_semantics<parallel>], iteration_bounds = array<i64: 2>, scalar_prefetch = 0 : i64, scratch_operands = 0 : i64, tpu.core_type = #tpu.core_type<tc>, window_params = [{transform_indices = @transform_0, window_bounds = array<i64: 1, 128, 32>}, {transform_indices = @transform_1, window_bounds = array<i64: 1, 8, 32>}, {transform_indices = @transform_2, window_bounds = array<i64: 1, 8, 128>}, {transform_indices = @transform_3, window_bounds = array<i64: 1, 8, 128>}, {transform_indices = @transform_4, window_bounds = array<i64: 1, 1, 32>}, {pipeline_mode = #tpu.pipeline_mode<synchronous>, transform_indices = @transform_5, window_bounds = array<i64: 32, 32>}, {pipeline_mode = #tpu.pipeline_mode<synchronous>, transform_indices = @transform_6, window_bounds = array<i64: 32, 32>}, {transform_indices = @transform_7, window_bounds = array<i64: 1, 8, 128>}]} {
    %c0 = arith.constant 0 : index
    %c0_0 = arith.constant 0 : index
    %c0_1 = arith.constant 0 : index
    %0 = vector.load %arg1[%c0, %c0_0, %c0_1] : memref<1x128x32xf32, #tpu.memory_space<vmem>>, vector<1x128x32xf32>
    %c0_2 = arith.constant 0 : index
    %c0_3 = arith.constant 0 : index
    %c0_4 = arith.constant 0 : index
    %1 = vector.load %arg4[%c0_2, %c0_3, %c0_4] : memref<1x8x128xi8, #tpu.memory_space<vmem>>, vector<1x8x128xi8>
    %c0_i8 = arith.constant 0 : i8
    %2 = vector.broadcast %c0_i8 : i8 to vector<1x8x128xi8>
    %3 = arith.cmpi ne, %1, %2 : vector<1x8x128xi8>
    %c0_5 = arith.constant 0 : index
    %c0_6 = arith.constant 0 : index
    %c0_7 = arith.constant 0 : index
    %4 = vector.load %arg2[%c0_5, %c0_6, %c0_7] : memref<1x8x32xf32, #tpu.memory_space<vmem>>, vector<1x8x32xf32>
    %5 = vector.shape_cast %4 : vector<1x8x32xf32> to vector<8x32xf32>
    %c0_8 = arith.constant 0 : index
    %c0_9 = arith.constant 0 : index
    %6 = vector.load %arg6[%c0_8, %c0_9] : memref<32x32xf32, #tpu.memory_space<vmem>>, vector<32x32xf32>
    %cst = arith.constant dense<0.000000e+00> : vector<8x32xf32>
    %7 = tpu.matmul %5, %6, %cst {dimension_numbers = #tpu.dot_dimension_numbers<[1], [0], [0], [1], [0, 0, 1, 1], [], []>} : vector<8x32xf32>, vector<32x32xf32>, vector<8x32xf32> -> vector<8x32xf32>
    %8 = arith.extui %3 : vector<1x8x128xi1> to vector<1x8x128xi32>
    %9 = arith.sitofp %8 : vector<1x8x128xi32> to vector<1x8x128xf32>
    "tpu.trace_start"() <{level = 10 : i32, message = "bgn,bnh->bgh"}> : () -> ()
    %cst_10 = arith.constant dense<0.000000e+00> : vector<1x8x32xf32>
    %10 = tpu.matmul %9, %0, %cst_10 {dimension_numbers = #tpu.dot_dimension_numbers<[2], [1], [1], [2], [0, 0, 0, 1, 1, 2], [0], [0]>} : vector<1x8x128xf32>, vector<1x128x32xf32>, vector<1x8x32xf32> -> vector<1x8x32xf32>
    "tpu.trace_stop"() : () -> ()
    %11 = vector.shape_cast %10 : vector<1x8x32xf32> to vector<8x32xf32>
    %c0_11 = arith.constant 0 : index
    %c0_12 = arith.constant 0 : index
    %12 = vector.load %arg7[%c0_11, %c0_12] : memref<32x32xf32, #tpu.memory_space<vmem>>, vector<32x32xf32>
    %cst_13 = arith.constant dense<0.000000e+00> : vector<8x32xf32>
    %13 = tpu.matmul %11, %12, %cst_13 {dimension_numbers = #tpu.dot_dimension_numbers<[1], [0], [0], [1], [0, 0, 1, 1], [], []>} : vector<8x32xf32>, vector<32x32xf32>, vector<8x32xf32> -> vector<8x32xf32>
    %14 = arith.addf %7, %13 : vector<8x32xf32>
    %15 = vector.shape_cast %14 : vector<8x32xf32> to vector<1x8x32xf32>
    %c0_14 = arith.constant 0 : index
    %c0_15 = arith.constant 0 : index
    %c0_16 = arith.constant 0 : index
    %16 = vector.load %arg5[%c0_14, %c0_15, %c0_16] : memref<1x1x32xf32, #tpu.memory_space<vmem>>, vector<1x1x32xf32>
    %17 = vector.broadcast %16 : vector<1x1x32xf32> to vector<1x8x32xf32>
    %18 = arith.addf %15, %17 : vector<1x8x32xf32>
    "tpu.trace_start"() <{level = 10 : i32, message = "bgh,bnh->bgn"}> : () -> ()
    %cst_17 = arith.constant dense<0.000000e+00> : vector<1x8x128xf32>
    %19 = tpu.matmul %18, %0, %cst_17 {dimension_numbers = #tpu.dot_dimension_numbers<[2], [2], [1], [1], [0, 0, 0, 1, 1, 1], [0], [0]>} : vector<1x8x32xf32>, vector<1x128x32xf32>, vector<1x8x128xf32> -> vector<1x8x128xf32>
    "tpu.trace_stop"() : () -> ()
    %c0_18 = arith.constant 0 : index
    %c0_19 = arith.constant 0 : index
    %c0_20 = arith.constant 0 : index
    %20 = vector.load %arg3[%c0_18, %c0_19, %c0_20] : memref<1x8x128xf32, #tpu.memory_space<vmem>>, vector<1x8x128xf32>
    %cst_21 = arith.constant 0.707106769 : f32
    %21 = vector.broadcast %cst_21 : f32 to vector<1x8x128xf32>
    %22 = arith.mulf %20, %21 : vector<1x8x128xf32>
    %23 = arith.subf %19, %22 : vector<1x8x128xf32>
    %24 = math.tanh %23 : vector<1x8x128xf32>
    %cst_22 = arith.constant 1.000000e+01 : f32
    %25 = vector.broadcast %cst_22 : f32 to vector<1x8x128xf32>
    %26 = arith.mulf %25, %24 : vector<1x8x128xf32>
    %cst_23 = arith.constant -1.000000e+08 : f32
    %27 = vector.broadcast %cst_23 : f32 to vector<1x8x128xf32>
    %28 = arith.select %3, %27, %26 : vector<1x8x128xi1>, vector<1x8x128xf32>
    %29 = math.exp %28 : vector<1x8x128xf32>
    %cst_24 = arith.constant dense<0.000000e+00> : vector<1x8xf32>
    %30 = vector.multi_reduction <add>, %29, %cst_24 [2] : vector<1x8x128xf32> to vector<1x8xf32>
    %31 = vector.shape_cast %30 : vector<1x8xf32> to vector<1x8x1xf32>
    %cst_25 = arith.constant 1.000000e-30 : f32
    %32 = vector.broadcast %cst_25 : f32 to vector<1x8x1xf32>
    %33 = arith.addf %31, %32 : vector<1x8x1xf32>
    %cst_26 = arith.constant 1.000000e+00 : f32
    %34 = vector.broadcast %cst_26 : f32 to vector<1x8x1xf32>
    %35 = arith.divf %34, %33 : vector<1x8x1xf32>
    %36 = vector.broadcast %35 : vector<1x8x1xf32> to vector<1x8x128xf32>
    %37 = arith.mulf %29, %36 : vector<1x8x128xf32>
    %c0_27 = arith.constant 0 : index
    %c0_28 = arith.constant 0 : index
    %c0_29 = arith.constant 0 : index
    %38 = vector.load %arg8[%c0_27, %c0_28, %c0_29] : memref<1x8x128xf32, #tpu.memory_space<vmem>>, vector<1x8x128xf32>
    tpu.vector_store %arg8[%c0_27, %c0_28, %c0_29], %37 {strides = array<i32>} : memref<1x8x128xf32, #tpu.memory_space<vmem>>, vector<1x8x128xf32>,
    return
  }
  func.func @transform_0(%arg0: i32) -> (i32, i32, i32) {
    %c0_i32 = arith.constant 0 : i32
    %c0_i32_0 = arith.constant 0 : i32
    %c0_i32_1 = arith.constant 0 : i32
    return %arg0, %c0_i32, %c0_i32_0 : i32, i32, i32
  }
  func.func @transform_1(%arg0: i32) -> (i32, i32, i32) {
    %c0_i32 = arith.constant 0 : i32
    %c0_i32_0 = arith.constant 0 : i32
    %c0_i32_1 = arith.constant 0 : i32
    return %arg0, %c0_i32, %c0_i32_0 : i32, i32, i32
  }
  func.func @transform_2(%arg0: i32) -> (i32, i32, i32) {
    %c0_i32 = arith.constant 0 : i32
    %c0_i32_0 = arith.constant 0 : i32
    %c0_i32_1 = arith.constant 0 : i32
    return %arg0, %c0_i32, %c0_i32_0 : i32, i32, i32
  }
  func.func @transform_3(%arg0: i32) -> (i32, i32, i32) {
    %c0_i32 = arith.constant 0 : i32
    %c0_i32_0 = arith.constant 0 : i32
    %c0_i32_1 = arith.constant 0 : i32
    return %arg0, %c0_i32, %c0_i32_0 : i32, i32, i32
  }
  func.func @transform_4(%arg0: i32) -> (i32, i32, i32) {
    %c0_i32 = arith.constant 0 : i32
    %c0_i32_0 = arith.constant 0 : i32
    %c0_i32_1 = arith.constant 0 : i32
    return %arg0, %c0_i32, %c0_i32_0 : i32, i32, i32
  }
  func.func @transform_5(%arg0: i32) -> (i32, i32) {
    %c0_i32 = arith.constant 0 : i32
    %c0_i32_0 = arith.constant 0 : i32
    %c0_i32_1 = arith.constant 0 : i32
    return %c0_i32, %c0_i32_0 : i32, i32
  }
  func.func @transform_6(%arg0: i32) -> (i32, i32) {
    %c0_i32 = arith.constant 0 : i32
    %c0_i32_0 = arith.constant 0 : i32
    %c0_i32_1 = arith.constant 0 : i32
    return %c0_i32, %c0_i32_0 : i32, i32
  }
  func.func @transform_7(%arg0: i32) -> (i32, i32, i32) {
    %c0_i32 = arith.constant 0 : i32
    %c0_i32_0 = arith.constant 0 : i32
    %c0_i32_1 = arith.constant 0 : i32
    return %arg0, %c0_i32, %c0_i32_0 : i32, i32, i32
  }
}

</mosaic_0001>

<llo_original>
// kernel: tpu_custom_call.1
$region0: #{tpu_custom_call.1}
  #allocation0 [shape = 'u32[]', space=smem, size = 0x4, offset = 0x4, fixed_abs, tag = 'smem constant byte address 0x4 - core index']
  #allocation1 [shape = 'u32[144,128]{1,0:T(1,128)}', space=vmem, size = 0x12000, scoped, tag = 'internal scratch']
  %s0 = inlined_call_operand.vmem [shape: f32[2,128,32], index: 0, kind: input, shape index: {}]
  %s1 = inlined_call_operand.vmem [shape: f32[2,8,32], index: 1, kind: input, shape index: {}]
  %s2 = inlined_call_operand.vmem [shape: f32[2,8,128], index: 2, kind: input, shape index: {}]
  %s3 = inlined_call_operand.vmem [shape: s8[2,8,128], index: 3, kind: input, shape index: {}]
  %s4 = inlined_call_operand.vmem [shape: f32[2,1,32], index: 4, kind: input, shape index: {}]
  %s5 = inlined_call_operand.vmem [shape: f32[32,32], index: 5, kind: input, shape index: {}]
  %s6 = inlined_call_operand.vmem [shape: f32[32,32], index: 6, kind: input, shape index: {}]
  %s7 = inlined_call_operand.hbm [shape: f32[2,8,128], index: 7, kind: output, shape index: {}]
  %s8 = sld [smem:[#allocation0]]
  $region61: #{tpu_custom_call.1} parent=0
    _
  %s10 = ssub.s32 1, %s8
  %s11 = scalar_select 0, %s10, %s8
  $region1: #{tpu_custom_call.1} parent=0
    #allocation2 [shape = 'u8[8192]{0}', space=vmem, size = 0x2000, scoped, tag = 'output window, operand 0']
    #allocation3 [shape = 's32[2]{0}', space=sflag, size = 0x8, scoped, tag = 'scoped memory for tpu_custom_call.1']
    %12 = vsyncpa [#allocation3], 0
    %s13 = scalar_lea.sflag [#allocation3], 1
    %14 = vsyncpa %s13, 0
    loop: start=0, step=1, limit=4
    $region2: #{tpu_custom_call.1} parent=1 // loop_pre_header
      _
    $region3: #{tpu_custom_call.1} parent=1 // loop_header
      %s16 = sphi 0, %s20
      %p17 = scmp.ge.s32.totalorder %s16, 4
      %s26 = sphi 0, %s28
      %s29 = sphi 0, %s26
      %s30 = sphi 0, %s29
      %s46 = sphi 0, %s30
      %s52 = sphi 0, %s54
      %s55 = sphi 0, %s52
      %s56 = sphi 0, %s55
      %s72 = sphi 0, %s56
      %s78 = sphi 0, %s80
      %s81 = sphi 0, %s78
      %s82 = sphi 0, %s81
      %s98 = sphi 0, %s82
      %s104 = sphi 0, %s106
      %s107 = sphi 0, %s104
      %s108 = sphi 0, %s107
      %s124 = sphi 0, %s108
      %s130 = sphi 0, %s132
      %s133 = sphi 0, %s130
      %s134 = sphi 0, %s133
      %s150 = sphi 0, %s134
      %s154 = sphi 0, %s154
      %s156 = sphi 0, %s154
      %s157 = sphi 0, %s156
      %s171 = sphi 0, %s157
      %s175 = sphi 0, %s175
      %s177 = sphi 0, %s175
      %s178 = sphi 0, %s177
      %s192 = sphi 0, %s178
      %s198 = sphi 0, %s200
      %s201 = sphi 0, %s198
      %s202 = sphi 0, %s201
      %s218 = sphi 0, %s202
    $region4: #{tpu_custom_call.1} parent=1 // loop_header_branch
      %19 = sbr.rel (%p17) target = $region8
    $region5: #{tpu_custom_call.1} parent=1 // loop_body
      %s21 = ssub.s32 %s16, 1
      %s22 = ssub.s32 %s16, 2
      %s23 = sadd.s32 %s16, 1
      %s24 = ssub.s32 %s16, %s23
      %p25 = scmp.eq.s32.totalorder %s24, 0
      %s27 = sadd.s32 %s26, 1
      %s28 = scalar_select %p25, %s26, %s27
      %p31 = pneg %p25
      %p32 = scmp.eq.s32.totalorder %s16, 1
      %p33 = por %p31, %p32
      %p34 = scmp.ne.s32.totalorder %s26, %s29
      %p35 = scmp.eq.s32.totalorder %s16, 0
      %p36 = por %p34, %p35
      %p37 = scmp.ne.s32.totalorder %s26, %s29
      %p38 = scmp.eq.s32.totalorder %s21, 1
      %p39 = por %p37, %p38
      %p40 = scmp.ne.s32.totalorder %s29, %s30
      %p41 = scmp.eq.s32.totalorder %s21, 0
      %p42 = por %p40, %p41
      %p43 = scmp.ne.s32.totalorder %s29, %s30
      %p44 = scmp.eq.s32.totalorder %s22, 1
      %p45 = por %p43, %p44
      %p47 = scmp.ne.s32.totalorder %s30, %s46
      %p48 = scmp.eq.s32.totalorder %s22, 0
      %p49 = por %p47, %p48
      %s50 = ssub.s32 %s16, %s23
      %p51 = scmp.eq.s32.totalorder %s50, 0
      %s53 = sadd.s32 %s52, 1
      %s54 = scalar_select %p51, %s52, %s53
      %p57 = pneg %p51
      %p58 = scmp.eq.s32.totalorder %s16, 1
      %p59 = por %p57, %p58
      %p60 = scmp.ne.s32.totalorder %s52, %s55
      %p61 = scmp.eq.s32.totalorder %s16, 0
      %p62 = por %p60, %p61
      %p63 = scmp.ne.s32.totalorder %s52, %s55
      %p64 = scmp.eq.s32.totalorder %s21, 1
      %p65 = por %p63, %p64
      %p66 = scmp.ne.s32.totalorder %s55, %s56
      %p67 = scmp.eq.s32.totalorder %s21, 0
      %p68 = por %p66, %p67
      %p69 = scmp.ne.s32.totalorder %s55, %s56
      %p70 = scmp.eq.s32.totalorder %s22, 1
      %p71 = por %p69, %p70
      %p73 = scmp.ne.s32.totalorder %s56, %s72
      %p74 = scmp.eq.s32.totalorder %s22, 0
      %p75 = por %p73, %p74
      %s76 = ssub.s32 %s16, %s23
      %p77 = scmp.eq.s32.totalorder %s76, 0
      %s79 = sadd.s32 %s78, 1
      %s80 = scalar_select %p77, %s78, %s79
      %p83 = pneg %p77
      %p84 = scmp.eq.s32.totalorder %s16, 1
      %p85 = por %p83, %p84
      %p86 = scmp.ne.s32.totalorder %s78, %s81
      %p87 = scmp.eq.s32.totalorder %s16, 0
      %p88 = por %p86, %p87
      %p89 = scmp.ne.s32.totalorder %s78, %s81
      %p90 = scmp.eq.s32.totalorder %s21, 1
      %p91 = por %p89, %p90
      %p92 = scmp.ne.s32.totalorder %s81, %s82
      %p93 = scmp.eq.s32.totalorder %s21, 0
      %p94 = por %p92, %p93
      %p95 = scmp.ne.s32.totalorder %s81, %s82
      %p96 = scmp.eq.s32.totalorder %s22, 1
      %p97 = por %p95, %p96
      %p99 = scmp.ne.s32.totalorder %s82, %s98
      %p100 = scmp.eq.s32.totalorder %s22, 0
      %p101 = por %p99, %p100
      %s102 = ssub.s32 %s16, %s23
      %p103 = scmp.eq.s32.totalorder %s102, 0
      %s105 = sadd.s32 %s104, 1
      %s106 = scalar_select %p103, %s104, %s105
      %p109 = pneg %p103
      %p110 = scmp.eq.s32.totalorder %s16, 1
      %p111 = por %p109, %p110
      %p112 = scmp.ne.s32.totalorder %s104, %s107
      %p113 = scmp.eq.s32.totalorder %s16, 0
      %p114 = por %p112, %p113
      %p115 = scmp.ne.s32.totalorder %s104, %s107
      %p116 = scmp.eq.s32.totalorder %s21, 1
      %p117 = por %p115, %p116
      %p118 = scmp.ne.s32.totalorder %s107, %s108
      %p119 = scmp.eq.s32.totalorder %s21, 0
      %p120 = por %p118, %p119
      %p121 = scmp.ne.s32.totalorder %s107, %s108
      %p122 = scmp.eq.s32.totalorder %s22, 1
      %p123 = por %p121, %p122
      %p125 = scmp.ne.s32.totalorder %s108, %s124
      %p126 = scmp.eq.s32.totalorder %s22, 0
      %p127 = por %p125, %p126
      %s128 = ssub.s32 %s16, %s23
      %p129 = scmp.eq.s32.totalorder %s128, 0
      %s131 = sadd.s32 %s130, 1
      %s132 = scalar_select %p129, %s130, %s131
      %p135 = pneg %p129
      %p136 = scmp.eq.s32.totalorder %s16, 1
      %p137 = por %p135, %p136
      %p138 = scmp.ne.s32.totalorder %s130, %s133
      %p139 = scmp.eq.s32.totalorder %s16, 0
      %p140 = por %p138, %p139
      %p141 = scmp.ne.s32.totalorder %s130, %s133
      %p142 = scmp.eq.s32.totalorder %s21, 1
      %p143 = por %p141, %p142
      %p144 = scmp.ne.s32.totalorder %s133, %s134
      %p145 = scmp.eq.s32.totalorder %s21, 0
      %p146 = por %p144, %p145
      %p147 = scmp.ne.s32.totalorder %s133, %s134
      %p148 = scmp.eq.s32.totalorder %s22, 1
      %p149 = por %p147, %p148
      %p151 = scmp.ne.s32.totalorder %s134, %s150
      %p152 = scmp.eq.s32.totalorder %s22, 0
      %p153 = por %p151, %p152
      %s155 = sadd.s32 %s154, 1
      %p158 = scmp.eq.s32.totalorder %s16, 1
      %p159 = scmp.ne.s32.totalorder %s154, %s156
      %p160 = scmp.eq.s32.totalorder %s16, 0
      %p161 = por %p159, %p160
      %p162 = scmp.ne.s32.totalorder %s154, %s156
      %p163 = scmp.eq.s32.totalorder %s21, 1
      %p164 = por %p162, %p163
      %p165 = scmp.ne.s32.totalorder %s156, %s157
      %p166 = scmp.eq.s32.totalorder %s21, 0
      %p167 = por %p165, %p166
      %p168 = scmp.ne.s32.totalorder %s156, %s157
      %p169 = scmp.eq.s32.totalorder %s22, 1
      %p170 = por %p168, %p169
      %p172 = scmp.ne.s32.totalorder %s157, %s171
      %p173 = scmp.eq.s32.totalorder %s22, 0
      %p174 = por %p172, %p173
      %s176 = sadd.s32 %s175, 1
      %p179 = scmp.eq.s32.totalorder %s16, 1
      %p180 = scmp.ne.s32.totalorder %s175, %s177
      %p181 = scmp.eq.s32.totalorder %s16, 0
      %p182 = por %p180, %p181
      %p183 = scmp.ne.s32.totalorder %s175, %s177
      %p184 = scmp.eq.s32.totalorder %s21, 1
      %p185 = por %p183, %p184
      %p186 = scmp.ne.s32.totalorder %s177, %s178
      %p187 = scmp.eq.s32.totalorder %s21, 0
      %p188 = por %p186, %p187
      %p189 = scmp.ne.s32.totalorder %s177, %s178
      %p190 = scmp.eq.s32.totalorder %s22, 1
      %p191 = por %p189, %p190
      %p193 = scmp.ne.s32.totalorder %s178, %s192
      %p194 = scmp.eq.s32.totalorder %s22, 0
      %p195 = por %p193, %p194
      %s196 = ssub.s32 %s16, %s23
      %p197 = scmp.eq.s32.totalorder %s196, 0
      %s199 = sadd.s32 %s198, 1
      %s200 = scalar_select %p197, %s198, %s199
      %p203 = pneg %p197
      %p204 = scmp.eq.s32.totalorder %s16, 1
      %p205 = por %p203, %p204
      %p206 = scmp.ne.s32.totalorder %s198, %s201
      %p207 = scmp.eq.s32.totalorder %s16, 0
      %p208 = por %p206, %p207
      %p209 = scmp.ne.s32.totalorder %s198, %s201
      %p210 = scmp.eq.s32.totalorder %s21, 1
      %p211 = por %p209, %p210
      %p212 = scmp.ne.s32.totalorder %s201, %s202
      %p213 = scmp.eq.s32.totalorder %s21, 0
      %p214 = por %p212, %p213
      %p215 = scmp.ne.s32.totalorder %s201, %s202
      %p216 = scmp.eq.s32.totalorder %s22, 1
      %p217 = por %p215, %p216
      %p219 = scmp.ne.s32.totalorder %s202, %s218
      %p220 = scmp.eq.s32.totalorder %s22, 0
      %p221 = por %p219, %p220
      %p222 = scmp.le.s32.totalorder 1, %s16
      %p223 = scmp.lt.s32.totalorder %s16, 3
      %p224 = pnand %p222, %p223
      %p225 = pneg %p224
      // Predicated region
      $region9: #{tpu_custom_call.1} parent=5 // pred_check
        _
      $region10: #{tpu_custom_call.1} parent=5 // pred_check_branch
        %227 = sbr.rel (%p224) target = $region12
      $region11: #{tpu_custom_call.1} parent=5 // pred_region
        %s228 = ssub.s32 %s16, 1
        // Predicated region
        $region13: #{tpu_custom_call.1} parent=11 // pred_check
          %p229 = pneg %p167
        $region14: #{tpu_custom_call.1} parent=11 // pred_check_branch
          %231 = sbr.rel (%p229) target = $region16
        $region15: #{tpu_custom_call.1} parent=11 // pred_region
          _
        $region16: #{tpu_custom_call.1} parent=11 // pred_fallthru
          _
        // Predicated region
        $region17: #{tpu_custom_call.1} parent=11 // pred_check
          %p232 = pneg %p188
        $region18: #{tpu_custom_call.1} parent=11 // pred_check_branch
          %234 = sbr.rel (%p232) target = $region20
        $region19: #{tpu_custom_call.1} parent=11 // pred_region
          _
        $region20: #{tpu_custom_call.1} parent=11 // pred_fallthru
          _
      $region12: #{tpu_custom_call.1} parent=5 // pred_fallthru
        _
      %p235 = scmp.lt.s32.totalorder %s16, 2
      // Predicated region
      $region21: #{tpu_custom_call.1} parent=5 // pred_check
        %p236 = pneg %p235
      $region22: #{tpu_custom_call.1} parent=5 // pred_check_branch
        %238 = sbr.rel (%p236) target = $region24
      $region23: #{tpu_custom_call.1} parent=5 // pred_region
        // Predicated region
        $region25: #{tpu_custom_call.1} parent=23 // pred_check
          %p239 = pneg %p36
        $region26: #{tpu_custom_call.1} parent=23 // pred_check_branch
          %241 = sbr.rel (%p239) target = $region28
        $region27: #{tpu_custom_call.1} parent=23 // pred_region
          %p242 = scmp.lt.s32.totalorder %s16, 1
          %s243 = scalar_select %p242, %s16, 1
          %s244 = smul.addr %s243, 16
          %s245 = smul.addr %s244, 8
          %s246 = scalar_lea.vmem %s0, %s245
        $region28: #{tpu_custom_call.1} parent=23 // pred_fallthru
          _
        // Predicated region
        $region29: #{tpu_custom_call.1} parent=23 // pred_check
          %p247 = pneg %p62
        $region30: #{tpu_custom_call.1} parent=23 // pred_check_branch
          %249 = sbr.rel (%p247) target = $region32
        $region31: #{tpu_custom_call.1} parent=23 // pred_region
          %p250 = scmp.lt.s32.totalorder %s16, 1
          %s251 = scalar_select %p250, %s16, 1
          %s252 = smul.addr %s251, 8
          %s253 = scalar_lea.vmem %s1, %s252
        $region32: #{tpu_custom_call.1} parent=23 // pred_fallthru
          _
        // Predicated region
        $region33: #{tpu_custom_call.1} parent=23 // pred_check
          %p254 = pneg %p88
        $region34: #{tpu_custom_call.1} parent=23 // pred_check_branch
          %256 = sbr.rel (%p254) target = $region36
        $region35: #{tpu_custom_call.1} parent=23 // pred_region
          %p257 = scmp.lt.s32.totalorder %s16, 1
          %s258 = scalar_select %p257, %s16, 1
          %s259 = smul.addr %s258, 8
          %s260 = scalar_lea.vmem %s2, %s259
        $region36: #{tpu_custom_call.1} parent=23 // pred_fallthru
          _
        // Predicated region
        $region37: #{tpu_custom_call.1} parent=23 // pred_check
          %p261 = pneg %p114
        $region38: #{tpu_custom_call.1} parent=23 // pred_check_branch
          %263 = sbr.rel (%p261) target = $region40
        $region39: #{tpu_custom_call.1} parent=23 // pred_region
          %p264 = scmp.lt.s32.totalorder %s16, 1
          %s265 = scalar_select %p264, %s16, 1
          %s266 = smul.addr %s265, 2
          %s267 = scalar_lea.vmem %s3, %s266
        $region40: #{tpu_custom_call.1} parent=23 // pred_fallthru
          _
        // Predicated region
        $region41: #{tpu_custom_call.1} parent=23 // pred_check
          %p268 = pneg %p140
        $region42: #{tpu_custom_call.1} parent=23 // pred_check_branch
          %270 = sbr.rel (%p268) target = $region44
        $region43: #{tpu_custom_call.1} parent=23 // pred_region
          %p271 = scmp.lt.s32.totalorder %s16, 1
          %s272 = scalar_select %p271, %s16, 1
          %s273 = scalar_lea.vmem %s4, %s272
        $region44: #{tpu_custom_call.1} parent=23 // pred_fallthru
          _
      $region24: #{tpu_custom_call.1} parent=5 // pred_fallthru
        _
      %p274 = scmp.le.s32.totalorder 1, %s16
      %p275 = scmp.lt.s32.totalorder %s16, 3
      %p276 = pnand %p274, %p275
      %p277 = pneg %p276
      // Predicated region
      $region45: #{tpu_custom_call.1} parent=5 // pred_check
        _
      $region46: #{tpu_custom_call.1} parent=5 // pred_check_branch
        %279 = sbr.rel (%p276) target = $region48
      $region47: #{tpu_custom_call.1} parent=5 // pred_region
        %s280 = ssub.s32 %s16, 1
        %p281 = scmp.lt.s32.totalorder %s21, 1
        %s282 = scalar_select %p281, %s21, 1
        %s283 = smul.addr %s282, 16
        %s284 = smul.addr %s283, 8
        %s285 = scalar_lea.vmem %s0, %s284
        %p286 = pneg %p42
        %p287 = pneg %p39
        %p288 = scmp.lt.s32.totalorder %s21, 1
        %s289 = scalar_select %p288, %s21, 1
        %s290 = smul.addr %s289, 8
        %s291 = scalar_lea.vmem %s1, %s290
        %p292 = pneg %p68
        %p293 = pneg %p65
        %p294 = scmp.lt.s32.totalorder %s21, 1
        %s295 = scalar_select %p294, %s21, 1
        %s296 = smul.addr %s295, 8
        %s297 = scalar_lea.vmem %s2, %s296
        %p298 = pneg %p94
        %p299 = pneg %p91
        %p300 = scmp.lt.s32.totalorder %s21, 1
        %s301 = scalar_select %p300, %s21, 1
        %s302 = smul.addr %s301, 2
        %s303 = scalar_lea.vmem %s3, %s302
        %p304 = pneg %p120
        %p305 = pneg %p117
        %p306 = scmp.lt.s32.totalorder %s21, 1
        %s307 = scalar_select %p306, %s21, 1
        %s308 = scalar_lea.vmem %s4, %s307
        %p309 = pneg %p146
        %p310 = pneg %p143
        %p311 = pneg %p167
        %p312 = pneg %p164
        %p313 = pneg %p188
        %p314 = pneg %p185
        %p315 = pneg %p214
        %p316 = pneg %p211
        %s317 = sand.u32 %s201, 1
        %s318 = scalar_lea.sflag [#allocation3], %s317
        %s319 = sand.u32 %s201, 1
        %s320 = smul.addr %s319, 8
        %s321 = scalar_lea.vmem [#allocation2], %s320
        %p322 = scmp.lt.s32.totalorder %s21, 1
        %s323 = scalar_select %p322, %s21, 1
        %s324 = smul.addr %s323, 16
        %s325 = smul.addr %s324, 8
        %s326 = scalar_lea.vmem %s0, %s325
        %p327 = scmp.lt.s32.totalorder %s21, 1
        %s328 = scalar_select %p327, %s21, 1
        %s329 = smul.addr %s328, 8
        %s330 = scalar_lea.vmem %s1, %s329
        %p331 = scmp.lt.s32.totalorder %s21, 1
        %s332 = scalar_select %p331, %s21, 1
        %s333 = smul.addr %s332, 8
        %s334 = scalar_lea.vmem %s2, %s333
        %p335 = scmp.lt.s32.totalorder %s21, 1
        %s336 = scalar_select %p335, %s21, 1
        %s337 = smul.addr %s336, 2
        %s338 = scalar_lea.vmem %s3, %s337
        %p339 = scmp.lt.s32.totalorder %s21, 1
        %s340 = scalar_select %p339, %s21, 1
        %s341 = scalar_lea.vmem %s4, %s340
        %v344 = vld [vmem:[%s326] sm:$0xff]
        %v345 = vld [vmem:[%s326 + $0x8] sm:$0xff]
        %v346 = vld [vmem:[%s326 + $0x10] sm:$0xff]
        %v347 = vld [vmem:[%s326 + $0x18] sm:$0xff]
        %v348 = vld [vmem:[%s326 + $0x20] sm:$0xff]
        %v349 = vld [vmem:[%s326 + $0x28] sm:$0xff]
        %v350 = vld [vmem:[%s326 + $0x30] sm:$0xff]
        %v351 = vld [vmem:[%s326 + $0x38] sm:$0xff]
        %v352 = vld [vmem:[%s326 + $0x40] sm:$0xff]
        %v353 = vld [vmem:[%s326 + $0x48] sm:$0xff]
        %v354 = vld [vmem:[%s326 + $0x50] sm:$0xff]
        %v355 = vld [vmem:[%s326 + $0x58] sm:$0xff]
        %v356 = vld [vmem:[%s326 + $0x60] sm:$0xff]
        %v357 = vld [vmem:[%s326 + $0x68] sm:$0xff]
        %v358 = vld [vmem:[%s326 + $0x70] sm:$0xff]
        %v359 = vld [vmem:[%s326 + $0x78] sm:$0xff]
        %v360 = vld [vmem:[%s338] sm:$0x3]
        %vm361 = vnez %v360
        %v362 = vld [vmem:[%s330] sm:$0xff]
        %v363 = vld [vmem:[%s5] sm:$0xff]
        %v364 = vld [vmem:[%s5 + $0x8] sm:$0xff]
        %v365 = vld [vmem:[%s5 + $0x10] sm:$0xff]
        %v366 = vld [vmem:[%s5 + $0x18] sm:$0xff]
        %v367 = vsel %vm361, 16843009, 0
        %v368 = vunpack.c.0.s8 %v367
        %vm369 = vcmp.ne.s32.totalorder %v368, 0
        %v370 = vsel %vm369, 1, 0
        %v371 = vcvt.s32.f32 %v370
        %372 = vmatprep.subr.mxu0 0.0
        %373 = vmatpush1.msra.mxu0 %v344
        %374 = vmatprep.subr.mxu0 0.0
        %375 = vmatpush1.msra.mxu0 %v345
        %376 = vmatprep.subr.mxu0 0.0
        %377 = vmatpush1.msra.mxu0 %v346
        %378 = vmatprep.subr.mxu0 0.0
        %379 = vmatpush1.msra.mxu0 %v347
        %380 = vmatprep.subr.mxu0 0.0
        %381 = vmatpush1.msra.mxu0 %v348
        %382 = vmatprep.subr.mxu0 0.0
        %383 = vmatpush1.msra.mxu0 %v349
        %384 = vmatprep.subr.mxu0 0.0
        %385 = vmatpush1.msra.mxu0 %v350
        %386 = vmatprep.subr.mxu0 0.0
        %387 = vmatpush1.msra.mxu0 %v351
        %388 = vmatprep.subr.mxu0 0.0
        %389 = vmatpush1.msra.mxu0 %v352
        %390 = vmatprep.subr.mxu0 0.0
        %391 = vmatpush1.msra.mxu0 %v353
        %392 = vmatprep.subr.mxu0 0.0
        %393 = vmatpush1.msra.mxu0 %v354
        %394 = vmatprep.subr.mxu0 0.0
        %395 = vmatpush1.msra.mxu0 %v355
        %396 = vmatprep.subr.mxu0 0.0
        %397 = vmatpush1.msra.mxu0 %v356
        %398 = vmatprep.subr.mxu0 0.0
        %399 = vmatpush1.msra.mxu0 %v357
        %400 = vmatprep.subr.mxu0 0.0
        %401 = vmatpush1.msra.mxu0 %v358
        %402 = vmatprep.subr.mxu0 0.0
        %403 = vmatpush1.msra.mxu0 %v359
        %404 = vmatprep.subr.mxu0 0.0
        %405 = vmatpush1.msra.mxu0 0.0
        %406 = vmatprep.subr.mxu0 0.0
        %407 = vmatpush1.msra.mxu0 0.0
        %408 = vmatprep.subr.mxu0 0.0
        %409 = vmatpush1.msra.mxu0 0.0
        %410 = vmatprep.subr.mxu0 0.0
        %411 = vmatpush1.msra.mxu0 0.0
        %412 = vmatprep.subr.mxu0 0.0
        %413 = vmatpush1.msra.mxu0 0.0
        %414 = vmatprep.subr.mxu0 0.0
        %415 = vmatpush1.msra.mxu0 0.0
        %416 = vmatprep.subr.mxu0 0.0
        %417 = vmatpush1.msra.mxu0 0.0
        %418 = vmatprep.subr.mxu0 0.0
        %419 = vmatpush1.msra.mxu0 0.0
        %420 = vmatprep.subr.mxu0 0.0
        %421 = vmatpush1.msra.mxu0 0.0
        %422 = vmatprep.subr.mxu0 0.0
        %423 = vmatpush1.msra.mxu0 0.0
        %424 = vmatprep.subr.mxu0 0.0
        %425 = vmatpush1.msra.mxu0 0.0
        %426 = vmatprep.subr.mxu0 0.0
        %427 = vmatpush1.msra.mxu0 0.0
        %428 = vmatprep.subr.mxu0 0.0
        %429 = vmatpush1.msra.mxu0 0.0
        %430 = vmatprep.subr.mxu0 0.0
        %431 = vmatpush1.msra.mxu0 0.0
        %432 = vmatprep.subr.mxu0 0.0
        %433 = vmatpush1.msra.mxu0 0.0
        %434 = vmatprep.subr.mxu0 0.0
        %435 = vmatpush1.msra.mxu0 0.0
        %436 = vmatprep.mubr.f32.mxu0 0.0
        %437 = vmatmul.mubr.f32.gmra.mrb[0].mxu0 %v371
        %v438 = vpop.f32.mrb[0].mxu0
        %v439 = vadd.f32 0.0, %v438
        %v440 = vpop.f32.mrb[0].mxu0
        %441 = vdwg.mxu0
        %v442 = vld [vmem:[%s6] sm:$0xff]
        %v443 = vld [vmem:[%s6 + $0x8] sm:$0xff]
        %v444 = vld [vmem:[%s6 + $0x10] sm:$0xff]
        %v445 = vld [vmem:[%s6 + $0x18] sm:$0xff]
        %vm446 = vcmask 261120
        %v448 = vsel %vm446, %v439, 0
        %450 = vmatprep.subr.mxu0 0.0
        %451 = vmatpush1.msra.mxu0 %v442
        %452 = vmatprep.subr.mxu0 0.0
        %453 = vmatpush1.msra.mxu0 %v443
        %454 = vmatprep.subr.mxu0 0.0
        %455 = vmatpush1.msra.mxu0 %v444
        %456 = vmatprep.subr.mxu0 0.0
        %457 = vmatpush1.msra.mxu0 %v445
        %458 = vmatprep.subr.mxu0 0.0
        %459 = vmatpush1.msra.mxu0 0.0
        %460 = vmatprep.subr.mxu0 0.0
        %461 = vmatpush1.msra.mxu0 0.0
        %462 = vmatprep.subr.mxu0 0.0
        %463 = vmatpush1.msra.mxu0 0.0
        %464 = vmatprep.subr.mxu0 0.0
        %465 = vmatpush1.msra.mxu0 0.0
        %466 = vmatprep.subr.mxu0 0.0
        %467 = vmatpush1.msra.mxu0 0.0
        %468 = vmatprep.subr.mxu0 0.0
        %469 = vmatpush1.msra.mxu0 0.0
        %470 = vmatprep.subr.mxu0 0.0
        %471 = vmatpush1.msra.mxu0 0.0
        %472 = vmatprep.subr.mxu0 0.0
        %473 = vmatpush1.msra.mxu0 0.0
        %474 = vmatprep.subr.mxu0 0.0
        %475 = vmatpush1.msra.mxu0 0.0
        %476 = vmatprep.subr.mxu0 0.0
        %477 = vmatpush1.msra.mxu0 0.0
        %478 = vmatprep.subr.mxu0 0.0
        %479 = vmatpush1.msra.mxu0 0.0
        %480 = vmatprep.subr.mxu0 0.0
        %481 = vmatpush1.msra.mxu0 0.0
        %482 = vmatprep.subr.mxu0 0.0
        %483 = vmatpush1.msra.mxu0 0.0
        %484 = vmatprep.subr.mxu0 0.0
        %485 = vmatpush1.msra.mxu0 0.0
        %486 = vmatprep.subr.mxu0 0.0
        %487 = vmatpush1.msra.mxu0 0.0
        %488 = vmatprep.subr.mxu0 0.0
        %489 = vmatpush1.msra.mxu0 0.0
        %490 = vmatprep.subr.mxu0 0.0
        %491 = vmatpush1.msra.mxu0 0.0
        %492 = vmatprep.subr.mxu0 0.0
        %493 = vmatpush1.msra.mxu0 0.0
        %494 = vmatprep.subr.mxu0 0.0
        %495 = vmatpush1.msra.mxu0 0.0
        %496 = vmatprep.subr.mxu0 0.0
        %497 = vmatpush1.msra.mxu0 0.0
        %498 = vmatprep.subr.mxu0 0.0
        %499 = vmatpush1.msra.mxu0 0.0
        %500 = vmatprep.subr.mxu0 0.0
        %501 = vmatpush1.msra.mxu0 0.0
        %502 = vmatprep.subr.mxu0 0.0
        %503 = vmatpush1.msra.mxu0 0.0
        %504 = vmatprep.subr.mxu0 0.0
        %505 = vmatpush1.msra.mxu0 0.0
        %506 = vmatprep.subr.mxu0 0.0
        %507 = vmatpush1.msra.mxu0 0.0
        %508 = vmatprep.subr.mxu0 0.0
        %509 = vmatpush1.msra.mxu0 0.0
        %510 = vmatprep.subr.mxu0 0.0
        %511 = vmatpush1.msra.mxu0 0.0
        %512 = vmatprep.subr.mxu0 0.0
        %513 = vmatpush1.msra.mxu0 0.0
        %514 = vmatprep.mubr.f32.mxu0 0.0
        %515 = vmatmul.mubr.f32.gmra.mrb[0].mxu0 %v448
        %v516 = vpop.f32.mrb[0].mxu0
        %v517 = vadd.f32 0.0, %v516
        %v518 = vpop.f32.mrb[0].mxu0
        %519 = vdwg.mxu0
        %v521 = vsel %vm446, %v362, 0
        %523 = vmatprep.subr.mxu0 0.0
        %524 = vmatpush1.msra.mxu0 %v363
        %525 = vmatprep.subr.mxu0 0.0
        %526 = vmatpush1.msra.mxu0 %v364
        %527 = vmatprep.subr.mxu0 0.0
        %528 = vmatpush1.msra.mxu0 %v365
        %529 = vmatprep.subr.mxu0 0.0
        %530 = vmatpush1.msra.mxu0 %v366
        %531 = vmatprep.subr.mxu0 0.0
        %532 = vmatpush1.msra.mxu0 0.0
        %533 = vmatprep.subr.mxu0 0.0
        %534 = vmatpush1.msra.mxu0 0.0
        %535 = vmatprep.subr.mxu0 0.0
        %536 = vmatpush1.msra.mxu0 0.0
        %537 = vmatprep.subr.mxu0 0.0
        %538 = vmatpush1.msra.mxu0 0.0
        %539 = vmatprep.subr.mxu0 0.0
        %540 = vmatpush1.msra.mxu0 0.0
        %541 = vmatprep.subr.mxu0 0.0
        %542 = vmatpush1.msra.mxu0 0.0
        %543 = vmatprep.subr.mxu0 0.0
        %544 = vmatpush1.msra.mxu0 0.0
        %545 = vmatprep.subr.mxu0 0.0
        %546 = vmatpush1.msra.mxu0 0.0
        %547 = vmatprep.subr.mxu0 0.0
        %548 = vmatpush1.msra.mxu0 0.0
        %549 = vmatprep.subr.mxu0 0.0
        %550 = vmatpush1.msra.mxu0 0.0
        %551 = vmatprep.subr.mxu0 0.0
        %552 = vmatpush1.msra.mxu0 0.0
        %553 = vmatprep.subr.mxu0 0.0
        %554 = vmatpush1.msra.mxu0 0.0
        %555 = vmatprep.subr.mxu0 0.0
        %556 = vmatpush1.msra.mxu0 0.0
        %557 = vmatprep.subr.mxu0 0.0
        %558 = vmatpush1.msra.mxu0 0.0
        %559 = vmatprep.subr.mxu0 0.0
        %560 = vmatpush1.msra.mxu0 0.0
        %561 = vmatprep.subr.mxu0 0.0
        %562 = vmatpush1.msra.mxu0 0.0
        %563 = vmatprep.subr.mxu0 0.0
        %564 = vmatpush1.msra.mxu0 0.0
        %565 = vmatprep.subr.mxu0 0.0
        %566 = vmatpush1.msra.mxu0 0.0
        %567 = vmatprep.subr.mxu0 0.0
        %568 = vmatpush1.msra.mxu0 0.0
        %569 = vmatprep.subr.mxu0 0.0
        %570 = vmatpush1.msra.mxu0 0.0
        %571 = vmatprep.subr.mxu0 0.0
        %572 = vmatpush1.msra.mxu0 0.0
        %573 = vmatprep.subr.mxu0 0.0
        %574 = vmatpush1.msra.mxu0 0.0
        %575 = vmatprep.subr.mxu0 0.0
        %576 = vmatpush1.msra.mxu0 0.0
        %577 = vmatprep.subr.mxu0 0.0
        %578 = vmatpush1.msra.mxu0 0.0
        %579 = vmatprep.subr.mxu0 0.0
        %580 = vmatpush1.msra.mxu0 0.0
        %581 = vmatprep.subr.mxu0 0.0
        %582 = vmatpush1.msra.mxu0 0.0
        %583 = vmatprep.subr.mxu0 0.0
        %584 = vmatpush1.msra.mxu0 0.0
        %585 = vmatprep.subr.mxu0 0.0
        %586 = vmatpush1.msra.mxu0 0.0
        %587 = vmatprep.mubr.f32.mxu0 0.0
        %588 = vmatmul.mubr.f32.gmra.mrb[0].mxu0 %v521
        %v589 = vpop.f32.mrb[0].mxu0
        %v590 = vadd.f32 %v517, %v589
        %v591 = vpop.f32.mrb[0].mxu0
        %592 = vdwg.mxu0
        %v593 = vld [vmem:[%s341] sm:$0x1]
        %v595 = vlaneseq
        %v596 = vshrl.u32 %v595, 7
        %v597 = vsub.s32 0, %v596
        %v598 = vrot.slane %v593, %v597
        %v600 = vadd.f32 %v590, %v598
        %v602 = vsel %vm446, %v600, 0
        %v605 = vsel %vm446, %v344, 0
        %v608 = vsel %vm446, %v345, 0
        %v611 = vsel %vm446, %v346, 0
        %v614 = vsel %vm446, %v347, 0
        %v617 = vsel %vm446, %v348, 0
        %v620 = vsel %vm446, %v349, 0
        %v623 = vsel %vm446, %v350, 0
        %v626 = vsel %vm446, %v351, 0
        %v629 = vsel %vm446, %v352, 0
        %v632 = vsel %vm446, %v353, 0
        %v635 = vsel %vm446, %v354, 0
        %v638 = vsel %vm446, %v355, 0
        %v641 = vsel %vm446, %v356, 0
        %v644 = vsel %vm446, %v357, 0
        %v647 = vsel %vm446, %v358, 0
        %v650 = vsel %vm446, %v359, 0
        %652 = vmatprep.subr.mxu0 0.0
        %653 = vmatpush1.xpose.msra.mxu0 %v605
        %654 = vmatprep.subr.mxu0 0.0
        %655 = vmatpush1.xpose.msra.mxu0 %v608
        %656 = vmatprep.subr.mxu0 0.0
        %657 = vmatpush1.xpose.msra.mxu0 %v611
        %658 = vmatprep.subr.mxu0 0.0
        %659 = vmatpush1.xpose.msra.mxu0 %v614
        %660 = vmatprep.subr.mxu0 0.0
        %661 = vmatpush1.xpose.msra.mxu0 %v617
        %662 = vmatprep.subr.mxu0 0.0
        %663 = vmatpush1.xpose.msra.mxu0 %v620
        %664 = vmatprep.subr.mxu0 0.0
        %665 = vmatpush1.xpose.msra.mxu0 %v623
        %666 = vmatprep.subr.mxu0 0.0
        %667 = vmatpush1.xpose.msra.mxu0 %v626
        %668 = vmatprep.subr.mxu0 0.0
        %669 = vmatpush1.xpose.msra.mxu0 %v629
        %670 = vmatprep.subr.mxu0 0.0
        %671 = vmatpush1.xpose.msra.mxu0 %v632
        %672 = vmatprep.subr.mxu0 0.0
        %673 = vmatpush1.xpose.msra.mxu0 %v635
        %674 = vmatprep.subr.mxu0 0.0
        %675 = vmatpush1.xpose.msra.mxu0 %v638
        %676 = vmatprep.subr.mxu0 0.0
        %677 = vmatpush1.xpose.msra.mxu0 %v641
        %678 = vmatprep.subr.mxu0 0.0
        %679 = vmatpush1.xpose.msra.mxu0 %v644
        %680 = vmatprep.subr.mxu0 0.0
        %681 = vmatpush1.xpose.msra.mxu0 %v647
        %682 = vmatprep.subr.mxu0 0.0
        %683 = vmatpush1.xpose.msra.mxu0 %v650
        %684 = vmatprep.subr.mxu0 0.0
        %685 = vmatpush1.xpose.msra.mxu0 0.0
        %686 = vmatprep.subr.mxu0 0.0
        %687 = vmatpush1.xpose.msra.mxu0 0.0
        %688 = vmatprep.subr.mxu0 0.0
        %689 = vmatpush1.xpose.msra.mxu0 0.0
        %690 = vmatprep.subr.mxu0 0.0
        %691 = vmatpush1.xpose.msra.mxu0 0.0
        %692 = vmatprep.subr.mxu0 0.0
        %693 = vmatpush1.xpose.msra.mxu0 0.0
        %694 = vmatprep.subr.mxu0 0.0
        %695 = vmatpush1.xpose.msra.mxu0 0.0
        %696 = vmatprep.subr.mxu0 0.0
        %697 = vmatpush1.xpose.msra.mxu0 0.0
        %698 = vmatprep.subr.mxu0 0.0
        %699 = vmatpush1.xpose.msra.mxu0 0.0
        %700 = vmatprep.subr.mxu0 0.0
        %701 = vmatpush1.xpose.msra.mxu0 0.0
        %702 = vmatprep.subr.mxu0 0.0
        %703 = vmatpush1.xpose.msra.mxu0 0.0
        %704 = vmatprep.subr.mxu0 0.0
        %705 = vmatpush1.xpose.msra.mxu0 0.0
        %706 = vmatprep.subr.mxu0 0.0
        %707 = vmatpush1.xpose.msra.mxu0 0.0
        %708 = vmatprep.subr.mxu0 0.0
        %709 = vmatpush1.xpose.msra.mxu0 0.0
        %710 = vmatprep.subr.mxu0 0.0
        %711 = vmatpush1.xpose.msra.mxu0 0.0
        %712 = vmatprep.subr.mxu0 0.0
        %713 = vmatpush1.xpose.msra.mxu0 0.0
        %714 = vmatprep.subr.mxu0 0.0
        %715 = vmatpush1.xpose.msra.mxu0 0.0
        %716 = vmatprep.mubr.f32.mxu0 0.0
        %717 = vmatmul.mubr.f32.gmra.mrb[0].mxu0 %v602
        %v718 = vpop.f32.mrb[0].mxu0
        %v719 = vadd.f32 0.0, %v718
        %v720 = vpop.f32.mrb[0].mxu0
        %721 = vdwg.mxu0
        %v722 = vld [vmem:[%s334] sm:$0xff]
        %v723 = vmul.f32 %v722, 0.70710677
        %v724 = vsub.f32 %v719, %v723
        %v725 = vtanh.pop %v724
        %v726 = vmul.f32 %v725, 10.0
        %v727 = vsel %vm369, -1e+08, %v726
        %v728 = vmul.f32 %v727, 1.442695
        %v729 = vpow.pop %v728
        %730 = vadd.xlane.f32.xlu0 %v729
        %v731 = vpop.xlane.xlu0 %730
        %v732 = vadd.f32 %v731, 1e-30
        %v733 = vrcp.pop %v732
        %v734 = vmul.f32 1.0, %v733
        %v735 = vmul.f32 %v729, %v734
        %736 = vst [vmem:[%s321] sm:$0xff] %v735
        %s737 = sand.u32 %s201, 1
        %s738 = scalar_lea.sflag [#allocation3], %s737
        %s739 = sand.u32 %s201, 1
        %s740 = smul.addr %s739, 8
        %s741 = scalar_lea.vmem [#allocation2], %s740
        // Predicated region
        $region49: #{tpu_custom_call.1} parent=47 // pred_check
          %p742 = pneg %p211
        $region50: #{tpu_custom_call.1} parent=47 // pred_check_branch
          %744 = sbr.rel (%p742) target = $region52
        $region51: #{tpu_custom_call.1} parent=47 // pred_region
          %s746 = ssub.s32 128, 128
          %747 = vsyncadd %s738, %s746
          %s748 = smul.addr %s21, 128
          %s749 = scalar_lea.hbm %s7, %s748
          %s751 = sshll.u32 %s741, 4
          %s752 = int_to_ptr.vmem [resolvable:$true] %s751
          %754 = dma.vmem_to_hbm [thread:$0]  %s752, 128, %s749, %s738
        $region52: #{tpu_custom_call.1} parent=47 // pred_fallthru
          _
      $region48: #{tpu_custom_call.1} parent=5 // pred_fallthru
        _
      %p755 = scmp.le.s32.totalorder 2, %s16
      // Predicated region
      $region53: #{tpu_custom_call.1} parent=5 // pred_check
        %p756 = pneg %p755
      $region54: #{tpu_custom_call.1} parent=5 // pred_check_branch
        %758 = sbr.rel (%p756) target = $region56
      $region55: #{tpu_custom_call.1} parent=5 // pred_region
        %s759 = ssub.s32 %s16, 2
        // Predicated region
        $region57: #{tpu_custom_call.1} parent=55 // pred_check
          %p760 = pneg %p217
        $region58: #{tpu_custom_call.1} parent=55 // pred_check_branch
          %762 = sbr.rel (%p760) target = $region60
        $region59: #{tpu_custom_call.1} parent=55 // pred_region
          %s763 = sand.u32 %s202, 1
          %s764 = scalar_lea.sflag [#allocation3], %s763
          %s765 = sand.u32 %s202, 1
          %s766 = smul.addr %s765, 8
          %s767 = scalar_lea.vmem [#allocation2], %s766
          %768 = dma.done %s764, 128
        $region60: #{tpu_custom_call.1} parent=55 // pred_fallthru
          _
      $region56: #{tpu_custom_call.1} parent=5 // pred_fallthru
        _
    $region6: #{tpu_custom_call.1} parent=1 // loop_footer
      %s20 = sadd.s32 1, %s16
    $region7: #{tpu_custom_call.1} parent=1 // loop_footer_branch
      %15 = sbr.rel target = $region3
    $region8: #{tpu_custom_call.1} parent=1 // loop_exit
      _
    %769 = vsyncpa [#allocation3], 1
    %s770 = scalar_lea.sflag [#allocation3], 1
    %771 = vsyncpa %s770, 1

</llo_original>
